<compile_context>
chip_gen: v5e
topology: v5e:2x2
jax: 0.10.0
libtpu: 0.0.40
codegen_flags: <defaults>
</compile_context>

<pallas_src>
import jax
import jax.numpy as jnp
from jax.experimental import pallas as pl
from jax.experimental.pallas import tpu as pltpu

ACTION_EMBED_DIM = 128


def _round_up(x, m):
    return ((x + m - 1) // m) * m


def _mlp_kernel(fm_ref, emb_ref, w1f_ref, w1a_ref, b1_ref,
                w2_ref, b2_ref, w3_ref, b3_ref, o_ref):
    # Layer 1: fm @ W1_feat + emb @ W1_act + b1, ReLU (the concat is fused away).
    h = jnp.dot(fm_ref[...], w1f_ref[...], preferred_element_type=jnp.float32)
    h = h + jnp.dot(emb_ref[...], w1a_ref[...], preferred_element_type=jnp.float32)
    h = jnp.maximum(h + b1_ref[...], 0.0)
    # Layer 2: Linear + ReLU (bf16 MXU input, f32 accumulation).
    h = jnp.dot(h.astype(w2_ref.dtype), w2_ref[...], preferred_element_type=jnp.float32)
    h = jnp.maximum(h + b2_ref[...], 0.0)
    # Layer 3: Linear (no activation).
    h = jnp.dot(h.astype(w3_ref.dtype), w3_ref[...], preferred_element_type=jnp.float32)
    h = h + b3_ref[...]
    o_ref[...] = h.astype(o_ref.dtype)


def forward_module_mlp(fm, emb, w1f, w1a, b1, w2, b2, w3, b3, *, block_b=256):
    """3-layer MLP with the concat fused into a split first-layer matmul.

    fm : (B, H)  bf16   (padded: B % 8 == 0, H % 128 == 0)
    emb: (B, A)  bf16   (A = 128)
    w1f: (H, H), w1a: (A, H), w2/w3: (H, H)  bf16
    b1/b2/b3: (1, H) f32
    returns (B, H) f32
    """
    B, H = fm.shape
    A = emb.shape[1]
    assert H % 128 == 0 and A % 128 == 0 and B % 8 == 0

    tb = min(block_b, B)
    assert B % tb == 0
    grid = (B // tb,)

    itemsize = lambda a: a.size * a.dtype.itemsize
    weight_bytes = sum(itemsize(a) for a in (w1f, w1a, w2, w3, b1, b2, b3))
    tile_bytes = tb * H * 2 + tb * A * 2 + tb * H * 4          # in tiles (bf16) + out tile (f32)
    # Budget: everything double-buffered + headroom; never below the default 32 MiB.
    vmem_limit = min(max(2 * (weight_bytes + tile_bytes) + (4 << 20), 32 << 20), 100 << 20)
    # TODO(synk): for very large hidden_dim (>~1.5-2k on v7x's 64 MiB VMEM) the resident
    # weight set no longer fits; split over an output-feature grid axis there.

    flops = 2 * B * H * (H + A) + 4 * B * H * H
    bytes_accessed = itemsize(fm) + itemsize(emb) + weight_bytes + B * H * 4

    return pl.pallas_call(
        _mlp_kernel,
        out_shape=jax.ShapeDtypeStruct((B, H), jnp.float32),
        grid=grid,
        in_specs=[
            pl.BlockSpec((tb, H), lambda i: (i, 0)),   # feature_maps tile
            pl.BlockSpec((tb, A), lambda i: (i, 0)),   # action embedding tile
            pl.BlockSpec((H, H), lambda i: (0, 0)),    # w1_feat (resident)
            pl.BlockSpec((A, H), lambda i: (0, 0)),    # w1_act  (resident)
            pl.BlockSpec((1, H), lambda i: (0, 0)),    # b1
            pl.BlockSpec((H, H), lambda i: (0, 0)),    # w2      (resident)
            pl.BlockSpec((1, H), lambda i: (0, 0)),    # b2
            pl.BlockSpec((H, H), lambda i: (0, 0)),    # w3      (resident)
            pl.BlockSpec((1, H), lambda i: (0, 0)),    # b3
        ],
        out_specs=pl.BlockSpec((tb, H), lambda i: (i, 0)),
        compiler_params=pltpu.CompilerParams(
            dimension_semantics=("parallel",),         # v7x: shard batch tiles over both TCs
            vmem_limit_bytes=int(vmem_limit),
        ),
        cost_estimate=pl.CostEstimate(
            flops=int(flops), transcendentals=0, bytes_accessed=int(bytes_accessed)),
    )(fm, emb, w1f, w1a, b1, w2, b2, w3, b3)


def forward_module(feature_maps, actions, params, *, block_b=256):
    """Full Forward_module forward pass.

    feature_maps: (B, hidden_dim) float32
    actions:      (B,) int32
    returns       (B, hidden_dim) float32
    """
    fm = feature_maps
    B, H = fm.shape
    A = params["embedding"].shape[1]

    # Lane/sublane-friendly padded sizes.
    Hp = _round_up(max(H, 128), 128)
    tb = min(block_b, _round_up(B, 8))
    Bp = _round_up(B, tb)

    # Embedding gather (tiny action_dim x 128 table) — XLA glue.
    emb = jnp.take(params["embedding"], actions, axis=0)

    # Split w1 so the concat disappears:  x @ w1 == fm @ w1[:H] + emb @ w1[H:].
    w1 = params["w1"]
    w1f, w1a = w1[:H, :], w1[H:, :]

    cast = lambda a: a.astype(jnp.bfloat16)

    def pad2(a, r, c):
        return jnp.pad(a, ((0, r - a.shape[0]), (0, c - a.shape[1])))

    fm_p = pad2(cast(fm), Bp, Hp)
    emb_p = pad2(cast(emb), Bp, A)
    w1f_p = pad2(cast(w1f), Hp, Hp)
    w1a_p = pad2(cast(w1a), A, Hp)
    w2_p = pad2(cast(params["w2"]), Hp, Hp)
    w3_p = pad2(cast(params["w3"]), Hp, Hp)
    b1_p = pad2(params["b1"].astype(jnp.float32), 1, Hp)
    b2_p = pad2(params["b2"].astype(jnp.float32), 1, Hp)
    b3_p = pad2(params["b3"].astype(jnp.float32), 1, Hp)

    out = forward_module_mlp(fm_p, emb_p, w1f_p, w1a_p, b1_p,
                             w2_p, b2_p, w3_p, b3_p, block_b=tb)
    return out[:B, :H]


def init_params(key, action_dim, hidden_dim, action_embedd_dim=ACTION_EMBED_DIM):
    ks = jax.random.split(key, 7)
    in_dim = hidden_dim + action_embedd_dim

    def linear_init(kw, kb, fan_in, fan_out):
        # torch.nn.Linear default init: U(-1/sqrt(fan_in), 1/sqrt(fan_in))
        bound = 1.0 / jnp.sqrt(fan_in)
        w = jax.random.uniform(kw, (fan_in, fan_out), jnp.float32, -bound, bound)
        b = jax.random.uniform(kb, (1, fan_out), jnp.float32, -bound, bound)
        return w, b

    embedding = jax.random.normal(ks[0], (action_dim, action_embedd_dim), jnp.float32)
    w1, b1 = linear_init(ks[1], ks[2], in_dim, hidden_dim)
    w2, b2 = linear_init(ks[3], ks[4], hidden_dim, hidden_dim)
    w3, b3 = linear_init(ks[5], ks[6], hidden_dim, hidden_dim)
    return {
        "embedding": embedding,
        "w1": w1, "b1": b1,
        "w2": w2, "b2": b2,
        "w3": w3, "b3": b3,
    }


if __name__ == "__main__":
    action_dim = 6
    hidden_dim = 128   # lane-dense hidden size for the demo
    batch = 16

    key = jax.random.PRNGKey(0)
    k_params, k_feat, k_act = jax.random.split(key, 3)

    params = init_params(k_params, action_dim, hidden_dim)
    feature_maps = jax.random.normal(k_feat, (batch, hidden_dim), jnp.float32)
    actions = jax.random.randint(k_act, (batch,), 0, action_dim, jnp.int32)

    out = forward_module(feature_maps, actions, params)
    out = jax.block_until_ready(out)

    # Pure-JAX reference mirroring the kernel's bf16-compute / f32-accumulate path.
    emb = jnp.take(params["embedding"], actions, axis=0)
    x = jnp.concatenate([feature_maps, emb], axis=-1).astype(jnp.bfloat16)
    w1 = params["w1"].astype(jnp.bfloat16)
    w2 = params["w2"].astype(jnp.bfloat16)
    w3 = params["w3"].astype(jnp.bfloat16)
    h = jnp.maximum(jnp.dot(x, w1, preferred_element_type=jnp.float32) + params["b1"], 0.0)
    h = jnp.maximum(jnp.dot(h.astype(jnp.bfloat16), w2,
                            preferred_element_type=jnp.float32) + params["b2"], 0.0)
    ref = jnp.dot(h.astype(jnp.bfloat16), w3,
                  preferred_element_type=jnp.float32) + params["b3"]

    assert out.shape == (batch, hidden_dim)
    max_err = float(jnp.max(jnp.abs(out - ref)))
    assert jnp.allclose(out, ref, atol=5e-2, rtol=5e-2), max_err

    print("KERNEL_OK")
</pallas_src>

<mosaic_0001>
module attributes {stable_mosaic.version = 11 : i64} {
  func.func @_mlp_kernel(%arg0: i32, %arg1: memref<16x128xbf16, #tpu.memory_space<vmem>>, %arg2: memref<16x128xbf16, #tpu.memory_space<vmem>>, %arg3: memref<128x128xbf16, #tpu.memory_space<vmem>>, %arg4: memref<128x128xbf16, #tpu.memory_space<vmem>>, %arg5: memref<1x128xf32, #tpu.memory_space<vmem>>, %arg6: memref<128x128xbf16, #tpu.memory_space<vmem>>, %arg7: memref<1x128xf32, #tpu.memory_space<vmem>>, %arg8: memref<128x128xbf16, #tpu.memory_space<vmem>>, %arg9: memref<1x128xf32, #tpu.memory_space<vmem>>, %arg10: memref<16x128xf32, #tpu.memory_space<vmem>>) attributes {dimension_semantics = [#tpu.dimension_semantics<parallel>], iteration_bounds = array<i64: 1>, scalar_prefetch = 0 : i64, scratch_operands = 0 : i64, tpu.core_type = #tpu.core_type<tc>, window_params = [{transform_indices = @transform_0, window_bounds = array<i64: 16, 128>}, {transform_indices = @transform_1, window_bounds = array<i64: 16, 128>}, {pipeline_mode = #tpu.pipeline_mode<synchronous>, transform_indices = @transform_2, window_bounds = array<i64: 128, 128>}, {pipeline_mode = #tpu.pipeline_mode<synchronous>, transform_indices = @transform_3, window_bounds = array<i64: 128, 128>}, {pipeline_mode = #tpu.pipeline_mode<synchronous>, transform_indices = @transform_4, window_bounds = array<i64: 1, 128>}, {pipeline_mode = #tpu.pipeline_mode<synchronous>, transform_indices = @transform_5, window_bounds = array<i64: 128, 128>}, {pipeline_mode = #tpu.pipeline_mode<synchronous>, transform_indices = @transform_6, window_bounds = array<i64: 1, 128>}, {pipeline_mode = #tpu.pipeline_mode<synchronous>, transform_indices = @transform_7, window_bounds = array<i64: 128, 128>}, {pipeline_mode = #tpu.pipeline_mode<synchronous>, transform_indices = @transform_8, window_bounds = array<i64: 1, 128>}, {transform_indices = @transform_9, window_bounds = array<i64: 16, 128>}]} {
    %c0 = arith.constant 0 : index
    %c0_0 = arith.constant 0 : index
    %0 = vector.load %arg1[%c0, %c0_0] : memref<16x128xbf16, #tpu.memory_space<vmem>>, vector<16x128xbf16>
    %c0_1 = arith.constant 0 : index
    %c0_2 = arith.constant 0 : index
    %1 = vector.load %arg3[%c0_1, %c0_2] : memref<128x128xbf16, #tpu.memory_space<vmem>>, vector<128x128xbf16>
    %cst = arith.constant dense<0.000000e+00> : vector<16x128xf32>
    %2 = tpu.matmul %0, %1, %cst {dimension_numbers = #tpu.dot_dimension_numbers<[1], [0], [0], [1], [0, 0, 1, 1], [], []>} : vector<16x128xbf16>, vector<128x128xbf16>, vector<16x128xf32> -> vector<16x128xf32>
    %c0_3 = arith.constant 0 : index
    %c0_4 = arith.constant 0 : index
    %3 = vector.load %arg2[%c0_3, %c0_4] : memref<16x128xbf16, #tpu.memory_space<vmem>>, vector<16x128xbf16>
    %c0_5 = arith.constant 0 : index
    %c0_6 = arith.constant 0 : index
    %4 = vector.load %arg4[%c0_5, %c0_6] : memref<128x128xbf16, #tpu.memory_space<vmem>>, vector<128x128xbf16>
    %cst_7 = arith.constant dense<0.000000e+00> : vector<16x128xf32>
    %5 = tpu.matmul %3, %4, %cst_7 {dimension_numbers = #tpu.dot_dimension_numbers<[1], [0], [0], [1], [0, 0, 1, 1], [], []>} : vector<16x128xbf16>, vector<128x128xbf16>, vector<16x128xf32> -> vector<16x128xf32>
    %6 = arith.addf %2, %5 : vector<16x128xf32>
    %c0_8 = arith.constant 0 : index
    %c0_9 = arith.constant 0 : index
    %7 = vector.load %arg5[%c0_8, %c0_9] : memref<1x128xf32, #tpu.memory_space<vmem>>, vector<1x128xf32>
    %8 = vector.broadcast %7 : vector<1x128xf32> to vector<16x128xf32>
    %9 = arith.addf %6, %8 : vector<16x128xf32>
    %cst_10 = arith.constant 0.000000e+00 : f32
    %10 = vector.broadcast %cst_10 : f32 to vector<16x128xf32>
    %11 = arith.maximumf %9, %10 : vector<16x128xf32>
    %12 = arith.truncf %11 : vector<16x128xf32> to vector<16x128xbf16>
    %c0_11 = arith.constant 0 : index
    %c0_12 = arith.constant 0 : index
    %13 = vector.load %arg6[%c0_11, %c0_12] : memref<128x128xbf16, #tpu.memory_space<vmem>>, vector<128x128xbf16>
    %cst_13 = arith.constant dense<0.000000e+00> : vector<16x128xf32>
    %14 = tpu.matmul %12, %13, %cst_13 {dimension_numbers = #tpu.dot_dimension_numbers<[1], [0], [0], [1], [0, 0, 1, 1], [], []>} : vector<16x128xbf16>, vector<128x128xbf16>, vector<16x128xf32> -> vector<16x128xf32>
    %c0_14 = arith.constant 0 : index
    %c0_15 = arith.constant 0 : index
    %15 = vector.load %arg7[%c0_14, %c0_15] : memref<1x128xf32, #tpu.memory_space<vmem>>, vector<1x128xf32>
    %16 = vector.broadcast %15 : vector<1x128xf32> to vector<16x128xf32>
    %17 = arith.addf %14, %16 : vector<16x128xf32>
    %cst_16 = arith.constant 0.000000e+00 : f32
    %18 = vector.broadcast %cst_16 : f32 to vector<16x128xf32>
    %19 = arith.maximumf %17, %18 : vector<16x128xf32>
    %20 = arith.truncf %19 : vector<16x128xf32> to vector<16x128xbf16>
    %c0_17 = arith.constant 0 : index
    %c0_18 = arith.constant 0 : index
    %21 = vector.load %arg8[%c0_17, %c0_18] : memref<128x128xbf16, #tpu.memory_space<vmem>>, vector<128x128xbf16>
    %cst_19 = arith.constant dense<0.000000e+00> : vector<16x128xf32>
    %22 = tpu.matmul %20, %21, %cst_19 {dimension_numbers = #tpu.dot_dimension_numbers<[1], [0], [0], [1], [0, 0, 1, 1], [], []>} : vector<16x128xbf16>, vector<128x128xbf16>, vector<16x128xf32> -> vector<16x128xf32>
    %c0_20 = arith.constant 0 : index
    %c0_21 = arith.constant 0 : index
    %23 = vector.load %arg9[%c0_20, %c0_21] : memref<1x128xf32, #tpu.memory_space<vmem>>, vector<1x128xf32>
    %24 = vector.broadcast %23 : vector<1x128xf32> to vector<16x128xf32>
    %25 = arith.addf %22, %24 : vector<16x128xf32>
    %c0_22 = arith.constant 0 : index
    %c0_23 = arith.constant 0 : index
    %26 = vector.load %arg10[%c0_22, %c0_23] : memref<16x128xf32, #tpu.memory_space<vmem>>, vector<16x128xf32>
    tpu.vector_store %arg10[%c0_22, %c0_23], %25 {strides = array<i32>} : memref<16x128xf32, #tpu.memory_space<vmem>>, vector<16x128xf32>,
    return
  }
  func.func @transform_0(%arg0: i32) -> (i32, i32) {
    %c0_i32 = arith.constant 0 : i32
    %c0_i32_0 = arith.constant 0 : i32
    return %arg0, %c0_i32 : i32, i32
  }
  func.func @transform_1(%arg0: i32) -> (i32, i32) {
    %c0_i32 = arith.constant 0 : i32
    %c0_i32_0 = arith.constant 0 : i32
    return %arg0, %c0_i32 : i32, i32
  }
  func.func @transform_2(%arg0: i32) -> (i32, i32) {
    %c0_i32 = arith.constant 0 : i32
    %c0_i32_0 = arith.constant 0 : i32
    %c0_i32_1 = arith.constant 0 : i32
    return %c0_i32, %c0_i32_0 : i32, i32
  }
  func.func @transform_3(%arg0: i32) -> (i32, i32) {
    %c0_i32 = arith.constant 0 : i32
    %c0_i32_0 = arith.constant 0 : i32
    %c0_i32_1 = arith.constant 0 : i32
    return %c0_i32, %c0_i32_0 : i32, i32
  }
  func.func @transform_4(%arg0: i32) -> (i32, i32) {
    %c0_i32 = arith.constant 0 : i32
    %c0_i32_0 = arith.constant 0 : i32
    %c0_i32_1 = arith.constant 0 : i32
    return %c0_i32, %c0_i32_0 : i32, i32
  }
  func.func @transform_5(%arg0: i32) -> (i32, i32) {
    %c0_i32 = arith.constant 0 : i32
    %c0_i32_0 = arith.constant 0 : i32
    %c0_i32_1 = arith.constant 0 : i32
    return %c0_i32, %c0_i32_0 : i32, i32
  }
  func.func @transform_6(%arg0: i32) -> (i32, i32) {
    %c0_i32 = arith.constant 0 : i32
    %c0_i32_0 = arith.constant 0 : i32
    %c0_i32_1 = arith.constant 0 : i32
    return %c0_i32, %c0_i32_0 : i32, i32
  }
  func.func @transform_7(%arg0: i32) -> (i32, i32) {
    %c0_i32 = arith.constant 0 : i32
    %c0_i32_0 = arith.constant 0 : i32
    %c0_i32_1 = arith.constant 0 : i32
    return %c0_i32, %c0_i32_0 : i32, i32
  }
  func.func @transform_8(%arg0: i32) -> (i32, i32) {
    %c0_i32 = arith.constant 0 : i32
    %c0_i32_0 = arith.constant 0 : i32
    %c0_i32_1 = arith.constant 0 : i32
    return %c0_i32, %c0_i32_0 : i32, i32
  }
  func.func @transform_9(%arg0: i32) -> (i32, i32) {
    %c0_i32 = arith.constant 0 : i32
    %c0_i32_0 = arith.constant 0 : i32
    return %arg0, %c0_i32 : i32, i32
  }
}

</mosaic_0001>

<llo_original>
// kernel: tpu_custom_call.1
$region0: #{tpu_custom_call.1}
  #allocation0 [shape = 'u32[]', space=smem, size = 0x4, offset = 0x4, fixed_abs, tag = 'smem constant byte address 0x4 - core index']
  #allocation1 [shape = 'u32[72,128]{1,0:T(1,128)}', space=vmem, size = 0x9000, scoped, tag = 'internal scratch']
  %s0 = inlined_call_operand.hbm [shape: bf16[16,128], index: 0, kind: input, shape index: {}]
  %s1 = inlined_call_operand.hbm [shape: bf16[16,128], index: 1, kind: input, shape index: {}]
  %s2 = inlined_call_operand.hbm [shape: bf16[128,128], index: 2, kind: input, shape index: {}]
  %s3 = inlined_call_operand.hbm [shape: bf16[128,128], index: 3, kind: input, shape index: {}]
  %s4 = inlined_call_operand.vmem [shape: f32[1,128], index: 4, kind: input, shape index: {}]
  %s5 = inlined_call_operand.hbm [shape: bf16[128,128], index: 5, kind: input, shape index: {}]
  %s6 = inlined_call_operand.vmem [shape: f32[1,128], index: 6, kind: input, shape index: {}]
  %s7 = inlined_call_operand.hbm [shape: bf16[128,128], index: 7, kind: input, shape index: {}]
  %s8 = inlined_call_operand.vmem [shape: f32[1,128], index: 8, kind: input, shape index: {}]
  %s9 = inlined_call_operand.hbm [shape: f32[16,128], index: 9, kind: output, shape index: {}]
  %s10 = sld [smem:[#allocation0]]
  $region70: #{tpu_custom_call.1} parent=0
    _
  %s12 = ssub.s32 1, %s10
  %s13 = scalar_select 0, %s12, %s10
  $region1: #{tpu_custom_call.1} parent=0
    #allocation2 [shape = 'u8[4096]{0}', space=vmem, size = 0x1000, scoped, tag = 'input window, operand 0, single buffered']
    #allocation3 [shape = 's32[1]{0}', space=sflag, size = 0x4, scoped, tag = 'scoped memory for tpu_custom_call.1']
    #allocation4 [shape = 's32[1]{0}', space=sflag, size = 0x4, scoped, tag = 'scoped memory for tpu_custom_call.1']
    #allocation5 [shape = 'u8[4096]{0}', space=vmem, size = 0x1000, scoped, tag = 'input window, operand 1, single buffered']
    #allocation6 [shape = 's32[1]{0}', space=sflag, size = 0x4, scoped, tag = 'scoped memory for tpu_custom_call.1']
    #allocation7 [shape = 'u8[32768]{0}', space=vmem, size = 0x8000, scoped, tag = 'input window, operand 2, single buffered']
    #allocation8 [shape = 'u8[32768]{0}', space=vmem, size = 0x8000, scoped, tag = 'input window, operand 3, single buffered']
    #allocation9 [shape = 's32[1]{0}', space=sflag, size = 0x4, scoped, tag = 'scoped memory for tpu_custom_call.1']
    #allocation10 [shape = 'u8[32768]{0}', space=vmem, size = 0x8000, scoped, tag = 'input window, operand 5, single buffered']
    #allocation11 [shape = 'u8[32768]{0}', space=vmem, size = 0x8000, scoped, tag = 'input window, operand 7, single buffered']
    #allocation12 [shape = 's32[1]{0}', space=sflag, size = 0x4, scoped, tag = 'scoped memory for tpu_custom_call.1']
    #allocation13 [shape = 'u8[8192]{0}', space=vmem, size = 0x2000, scoped, tag = 'output window, operand 0, single buffered']
    %14 = vsyncpa [#allocation3], 0
    %15 = vsyncpa [#allocation6], 0
    %16 = vsyncpa [#allocation9], 0
    %17 = vsyncpa [#allocation12], 0
    %18 = vsyncpa [#allocation4], 0
    // Predicated region
    $region2: #{tpu_custom_call.1} parent=1 // pred_check
      _
    $region3: #{tpu_custom_call.1} parent=1 // pred_check_branch
      %20 = sbr.rel (0) target = $region5
    $region4: #{tpu_custom_call.1} parent=1 // pred_region
      %22 = vsyncadd [#allocation3], 0
      %s23 = sshll.u32 %s0, 4
      %s24 = int_to_ptr.hbm [resolvable:$true] %s23
      %s25 = sshll.u32 [#allocation2], 4
      %s26 = int_to_ptr.vmem [resolvable:$true] %s25
      %31 = dma.hbm_to_vmem [thread:$0]  %s24, 128, %s26, [#allocation3], 64, 64, 4
    $region5: #{tpu_custom_call.1} parent=1 // pred_fallthru
      _
    // Predicated region
    $region6: #{tpu_custom_call.1} parent=1 // pred_check
      _
    $region7: #{tpu_custom_call.1} parent=1 // pred_check_branch
      %33 = sbr.rel (0) target = $region9
    $region8: #{tpu_custom_call.1} parent=1 // pred_region
      %35 = vsyncadd [#allocation6], 0
      %s36 = sshll.u32 %s1, 4
      %s37 = int_to_ptr.hbm [resolvable:$true] %s36
      %s38 = sshll.u32 [#allocation5], 4
      %s39 = int_to_ptr.vmem [resolvable:$true] %s38
      %44 = dma.hbm_to_vmem [thread:$0]  %s37, 128, %s39, [#allocation6], 64, 64, 4
    $region9: #{tpu_custom_call.1} parent=1 // pred_fallthru
      _
    // Predicated region
    $region10: #{tpu_custom_call.1} parent=1 // pred_check
      _
    $region11: #{tpu_custom_call.1} parent=1 // pred_check_branch
      %46 = sbr.rel (0) target = $region13
    $region12: #{tpu_custom_call.1} parent=1 // pred_region
      %48 = vsyncadd [#allocation6], 0
      %s49 = sshll.u32 %s2, 4
      %s50 = int_to_ptr.hbm [resolvable:$true] %s49
      %s51 = sshll.u32 [#allocation7], 4
      %s52 = int_to_ptr.vmem [resolvable:$true] %s51
      %57 = dma.hbm_to_vmem [thread:$0]  %s50, 1024, %s52, [#allocation6], 64, 64, 4
    $region13: #{tpu_custom_call.1} parent=1 // pred_fallthru
      _
    // Predicated region
    $region14: #{tpu_custom_call.1} parent=1 // pred_check
      _
    $region15: #{tpu_custom_call.1} parent=1 // pred_check_branch
      %59 = sbr.rel (0) target = $region17
    $region16: #{tpu_custom_call.1} parent=1 // pred_region
      %61 = vsyncadd [#allocation9], 0
      %s62 = sshll.u32 %s3, 4
      %s63 = int_to_ptr.hbm [resolvable:$true] %s62
      %s64 = sshll.u32 [#allocation8], 4
      %s65 = int_to_ptr.vmem [resolvable:$true] %s64
      %70 = dma.hbm_to_vmem [thread:$0]  %s63, 1024, %s65, [#allocation9], 64, 64, 4
    $region17: #{tpu_custom_call.1} parent=1 // pred_fallthru
      _
    // Predicated region
    $region18: #{tpu_custom_call.1} parent=1 // pred_check
      _
    $region19: #{tpu_custom_call.1} parent=1 // pred_check_branch
      %72 = sbr.rel (0) target = $region21
    $region20: #{tpu_custom_call.1} parent=1 // pred_region
      _
    $region21: #{tpu_custom_call.1} parent=1 // pred_fallthru
      _
    // Predicated region
    $region22: #{tpu_custom_call.1} parent=1 // pred_check
      _
    $region23: #{tpu_custom_call.1} parent=1 // pred_check_branch
      %74 = sbr.rel (0) target = $region25
    $region24: #{tpu_custom_call.1} parent=1 // pred_region
      %76 = vsyncadd [#allocation9], 0
      %s77 = sshll.u32 %s5, 4
      %s78 = int_to_ptr.hbm [resolvable:$true] %s77
      %s79 = sshll.u32 [#allocation10], 4
      %s80 = int_to_ptr.vmem [resolvable:$true] %s79
      %85 = dma.hbm_to_vmem [thread:$0]  %s78, 1024, %s80, [#allocation9], 64, 64, 4
    $region25: #{tpu_custom_call.1} parent=1 // pred_fallthru
      _
    // Predicated region
    $region26: #{tpu_custom_call.1} parent=1 // pred_check
      _
    $region27: #{tpu_custom_call.1} parent=1 // pred_check_branch
      %87 = sbr.rel (0) target = $region29
    $region28: #{tpu_custom_call.1} parent=1 // pred_region
      _
    $region29: #{tpu_custom_call.1} parent=1 // pred_fallthru
      _
    // Predicated region
    $region30: #{tpu_custom_call.1} parent=1 // pred_check
      _
    $region31: #{tpu_custom_call.1} parent=1 // pred_check_branch
      %89 = sbr.rel (0) target = $region33
    $region32: #{tpu_custom_call.1} parent=1 // pred_region
      %91 = vsyncadd [#allocation12], 0
      %s92 = sshll.u32 %s7, 4
      %s93 = int_to_ptr.hbm [resolvable:$true] %s92
      %s94 = sshll.u32 [#allocation11], 4
      %s95 = int_to_ptr.vmem [resolvable:$true] %s94
      %100 = dma.hbm_to_vmem [thread:$0]  %s93, 1024, %s95, [#allocation12], 64, 64, 4
    $region33: #{tpu_custom_call.1} parent=1 // pred_fallthru
      _
    // Predicated region
    $region34: #{tpu_custom_call.1} parent=1 // pred_check
      _
    $region35: #{tpu_custom_call.1} parent=1 // pred_check_branch
      %102 = sbr.rel (0) target = $region37
    $region36: #{tpu_custom_call.1} parent=1 // pred_region
      _
    $region37: #{tpu_custom_call.1} parent=1 // pred_fallthru
      _
    // Predicated region
    $region38: #{tpu_custom_call.1} parent=1 // pred_check
      _
    $region39: #{tpu_custom_call.1} parent=1 // pred_check_branch
      %104 = sbr.rel (0) target = $region41
    $region40: #{tpu_custom_call.1} parent=1 // pred_region
      %106 = dma.done [#allocation3], 128
    $region41: #{tpu_custom_call.1} parent=1 // pred_fallthru
      _
    // Predicated region
    $region42: #{tpu_custom_call.1} parent=1 // pred_check
      _
    $region43: #{tpu_custom_call.1} parent=1 // pred_check_branch
      %108 = sbr.rel (0) target = $region45
    $region44: #{tpu_custom_call.1} parent=1 // pred_region
      %110 = dma.done [#allocation6], 128
    $region45: #{tpu_custom_call.1} parent=1 // pred_fallthru
      _
    // Predicated region
    $region46: #{tpu_custom_call.1} parent=1 // pred_check
      _
    $region47: #{tpu_custom_call.1} parent=1 // pred_check_branch
      %112 = sbr.rel (0) target = $region49
    $region48: #{tpu_custom_call.1} parent=1 // pred_region
      %114 = dma.done [#allocation6], 1024
    $region49: #{tpu_custom_call.1} parent=1 // pred_fallthru
      _
    // Predicated region
    $region50: #{tpu_custom_call.1} parent=1 // pred_check
      _
    $region51: #{tpu_custom_call.1} parent=1 // pred_check_branch
      %116 = sbr.rel (0) target = $region53
    $region52: #{tpu_custom_call.1} parent=1 // pred_region
      %118 = dma.done [#allocation9], 1024
    $region53: #{tpu_custom_call.1} parent=1 // pred_fallthru
      _
    // Predicated region
    $region54: #{tpu_custom_call.1} parent=1 // pred_check
      _
    $region55: #{tpu_custom_call.1} parent=1 // pred_check_branch
      %120 = sbr.rel (0) target = $region57
    $region56: #{tpu_custom_call.1} parent=1 // pred_region
      %122 = dma.done [#allocation9], 1024
    $region57: #{tpu_custom_call.1} parent=1 // pred_fallthru
      _
    // Predicated region
    $region58: #{tpu_custom_call.1} parent=1 // pred_check
      _
    $region59: #{tpu_custom_call.1} parent=1 // pred_check_branch
      %124 = sbr.rel (0) target = $region61
    $region60: #{tpu_custom_call.1} parent=1 // pred_region
      %126 = dma.done [#allocation12], 1024
    $region61: #{tpu_custom_call.1} parent=1 // pred_fallthru
      _
    %v127 = vld [vmem:[#allocation2] sm:$0xf]
    %v128 = vld [vmem:[#allocation2 + $0x4] sm:$0xf]
    %v129 = vld [vmem:[#allocation7] sm:$0xf]
    %v130 = vld [vmem:[#allocation7 + $0x4] sm:$0xf]
    %v131 = vld [vmem:[#allocation7 + $0x8] sm:$0xf]
    %v132 = vld [vmem:[#allocation7 + $0xc] sm:$0xf]
    %v133 = vld [vmem:[#allocation7 + $0x10] sm:$0xf]
    %v134 = vld [vmem:[#allocation7 + $0x14] sm:$0xf]
    %v135 = vld [vmem:[#allocation7 + $0x18] sm:$0xf]
    %v136 = vld [vmem:[#allocation7 + $0x1c] sm:$0xf]
    %v137 = vld [vmem:[#allocation7 + $0x20] sm:$0xf]
    %v138 = vld [vmem:[#allocation7 + $0x24] sm:$0xf]
    %v139 = vld [vmem:[#allocation7 + $0x28] sm:$0xf]
    %v140 = vld [vmem:[#allocation7 + $0x2c] sm:$0xf]
    %v141 = vld [vmem:[#allocation7 + $0x30] sm:$0xf]
    %v142 = vld [vmem:[#allocation7 + $0x34] sm:$0xf]
    %v143 = vld [vmem:[#allocation7 + $0x38] sm:$0xf]
    %v144 = vld [vmem:[#allocation7 + $0x3c] sm:$0xf]
    %v145 = vld [vmem:[#allocation5] sm:$0xf]
    %v146 = vld [vmem:[#allocation5 + $0x4] sm:$0xf]
    %v147 = vld [vmem:[#allocation8] sm:$0xf]
    %v148 = vld [vmem:[#allocation8 + $0x4] sm:$0xf]
    %v149 = vld [vmem:[#allocation8 + $0x8] sm:$0xf]
    %v150 = vld [vmem:[#allocation8 + $0xc] sm:$0xf]
    %v151 = vld [vmem:[#allocation8 + $0x10] sm:$0xf]
    %v152 = vld [vmem:[#allocation8 + $0x14] sm:$0xf]
    %v153 = vld [vmem:[#allocation8 + $0x18] sm:$0xf]
    %v154 = vld [vmem:[#allocation8 + $0x1c] sm:$0xf]
    %v155 = vld [vmem:[#allocation8 + $0x20] sm:$0xf]
    %v156 = vld [vmem:[#allocation8 + $0x24] sm:$0xf]
    %v157 = vld [vmem:[#allocation8 + $0x28] sm:$0xf]
    %v158 = vld [vmem:[#allocation8 + $0x2c] sm:$0xf]
    %v159 = vld [vmem:[#allocation8 + $0x30] sm:$0xf]
    %v160 = vld [vmem:[#allocation8 + $0x34] sm:$0xf]
    %v161 = vld [vmem:[#allocation8 + $0x38] sm:$0xf]
    %v162 = vld [vmem:[#allocation8 + $0x3c] sm:$0xf]
    %v165 = vunpack.c.l.b16 %v145
    %v166 = vunpack.c.l.b16 %v146
    %v167 = vpack.c.b16 %v166, %v165
    %v185 = vunpack.c.l.b16 %v147
    %v186 = vunpack.c.l.b16 %v148
    %v187 = vunpack.c.l.b16 %v149
    %v188 = vunpack.c.l.b16 %v150
    %v189 = vunpack.c.l.b16 %v151
    %v190 = vunpack.c.l.b16 %v152
    %v191 = vunpack.c.l.b16 %v153
    %v192 = vunpack.c.l.b16 %v154
    %v193 = vunpack.c.l.b16 %v155
    %v194 = vunpack.c.l.b16 %v156
    %v195 = vunpack.c.l.b16 %v157
    %v196 = vunpack.c.l.b16 %v158
    %v197 = vunpack.c.l.b16 %v159
    %v198 = vunpack.c.l.b16 %v160
    %v199 = vunpack.c.l.b16 %v161
    %v200 = vunpack.c.l.b16 %v162
    %v201 = vpack.c.b16 %v186, %v185
    %v202 = vpack.c.b16 %v188, %v187
    %v203 = vpack.c.b16 %v190, %v189
    %v204 = vpack.c.b16 %v192, %v191
    %v205 = vpack.c.b16 %v194, %v193
    %v206 = vpack.c.b16 %v196, %v195
    %v207 = vpack.c.b16 %v198, %v197
    %v208 = vpack.c.b16 %v200, %v199
    %217 = vmatpush.bf16.msra.mxu0 %v208
    %218 = vmatpush.bf16.msra.mxu0 %v207
    %219 = vmatpush.bf16.msra.mxu0 %v206
    %220 = vmatpush.bf16.msra.mxu0 %v205
    %221 = vmatpush.bf16.msra.mxu0 %v204
    %222 = vmatpush.bf16.msra.mxu0 %v203
    %223 = vmatpush.bf16.msra.mxu0 %v202
    %224 = vmatpush.bf16.msra.mxu0 %v201
    %225 = vmatmul.bf16.gmra.mxu0 %v167
    %v226 = vpop.f32.mrf.mxu0
    %v227 = vadd.f32 0.0, %v226
    %v228 = vpop.f32.mrf.mxu0
    %v229 = vadd.f32 0.0, %v228
    %230 = vdwg.mxu0
    %v233 = vunpack.c.l.b16 %v127
    %v234 = vunpack.c.l.b16 %v128
    %v235 = vpack.c.b16 %v234, %v233
    %v253 = vunpack.c.l.b16 %v129
    %v254 = vunpack.c.l.b16 %v130
    %v255 = vunpack.c.l.b16 %v131
    %v256 = vunpack.c.l.b16 %v132
    %v257 = vunpack.c.l.b16 %v133
    %v258 = vunpack.c.l.b16 %v134
    %v259 = vunpack.c.l.b16 %v135
    %v260 = vunpack.c.l.b16 %v136
    %v261 = vunpack.c.l.b16 %v137
    %v262 = vunpack.c.l.b16 %v138
    %v263 = vunpack.c.l.b16 %v139
    %v264 = vunpack.c.l.b16 %v140
    %v265 = vunpack.c.l.b16 %v141
    %v266 = vunpack.c.l.b16 %v142
    %v267 = vunpack.c.l.b16 %v143
    %v268 = vunpack.c.l.b16 %v144
    %v269 = vpack.c.b16 %v254, %v253
    %v270 = vpack.c.b16 %v256, %v255
    %v271 = vpack.c.b16 %v258, %v257
    %v272 = vpack.c.b16 %v260, %v259
    %v273 = vpack.c.b16 %v262, %v261
    %v274 = vpack.c.b16 %v264, %v263
    %v275 = vpack.c.b16 %v266, %v265
    %v276 = vpack.c.b16 %v268, %v267
    %285 = vmatpush.bf16.msra.mxu0 %v276
    %286 = vmatpush.bf16.msra.mxu0 %v275
    %287 = vmatpush.bf16.msra.mxu0 %v274
    %288 = vmatpush.bf16.msra.mxu0 %v273
    %289 = vmatpush.bf16.msra.mxu0 %v272
    %290 = vmatpush.bf16.msra.mxu0 %v271
    %291 = vmatpush.bf16.msra.mxu0 %v270
    %292 = vmatpush.bf16.msra.mxu0 %v269
    %293 = vmatmul.bf16.gmra.mxu0 %v235
    %v294 = vpop.f32.mrf.mxu0
    %v295 = vadd.f32 %v227, %v294
    %v296 = vpop.f32.mrf.mxu0
    %v297 = vadd.f32 %v229, %v296
    %298 = vdwg.mxu0
    %v299 = vld [vmem:[%s4] sm:$0x1]
    %v301 = vperm.slane %v299, 0
    %v303 = vadd.f32 %v295, %v301
    %v304 = vadd.f32 %v297, %v301
    %v305 = vmax.f32 %v303, 0.0
    %v306 = vmax.f32 %v304, 0.0
    %v307 = vpack.c.bf16 %v306, %v305
    %v308 = vld [vmem:[#allocation10] sm:$0xf]
    %v309 = vld [vmem:[#allocation10 + $0x4] sm:$0xf]
    %v310 = vld [vmem:[#allocation10 + $0x8] sm:$0xf]
    %v311 = vld [vmem:[#allocation10 + $0xc] sm:$0xf]
    %v312 = vld [vmem:[#allocation10 + $0x10] sm:$0xf]
    %v313 = vld [vmem:[#allocation10 + $0x14] sm:$0xf]
    %v314 = vld [vmem:[#allocation10 + $0x18] sm:$0xf]
    %v315 = vld [vmem:[#allocation10 + $0x1c] sm:$0xf]
    %v316 = vld [vmem:[#allocation10 + $0x20] sm:$0xf]
    %v317 = vld [vmem:[#allocation10 + $0x24] sm:$0xf]
    %v318 = vld [vmem:[#allocation10 + $0x28] sm:$0xf]
    %v319 = vld [vmem:[#allocation10 + $0x2c] sm:$0xf]
    %v320 = vld [vmem:[#allocation10 + $0x30] sm:$0xf]
    %v321 = vld [vmem:[#allocation10 + $0x34] sm:$0xf]
    %v322 = vld [vmem:[#allocation10 + $0x38] sm:$0xf]
    %v323 = vld [vmem:[#allocation10 + $0x3c] sm:$0xf]
    %v324 = vld [vmem:[%s6] sm:$0x1]
    %v326 = vperm.slane %v324, 0
    %v344 = vunpack.c.l.b16 %v308
    %v345 = vunpack.c.l.b16 %v309
    %v346 = vunpack.c.l.b16 %v310
    %v347 = vunpack.c.l.b16 %v311
    %v348 = vunpack.c.l.b16 %v312
    %v349 = vunpack.c.l.b16 %v313
    %v350 = vunpack.c.l.b16 %v314
    %v351 = vunpack.c.l.b16 %v315
    %v352 = vunpack.c.l.b16 %v316
    %v353 = vunpack.c.l.b16 %v317
    %v354 = vunpack.c.l.b16 %v318
    %v355 = vunpack.c.l.b16 %v319
    %v356 = vunpack.c.l.b16 %v320
    %v357 = vunpack.c.l.b16 %v321
    %v358 = vunpack.c.l.b16 %v322
    %v359 = vunpack.c.l.b16 %v323
    %v360 = vpack.c.b16 %v345, %v344
    %v361 = vpack.c.b16 %v347, %v346
    %v362 = vpack.c.b16 %v349, %v348
    %v363 = vpack.c.b16 %v351, %v350
    %v364 = vpack.c.b16 %v353, %v352
    %v365 = vpack.c.b16 %v355, %v354
    %v366 = vpack.c.b16 %v357, %v356
    %v367 = vpack.c.b16 %v359, %v358
    %376 = vmatpush.bf16.msra.mxu0 %v367
    %377 = vmatpush.bf16.msra.mxu0 %v366
    %378 = vmatpush.bf16.msra.mxu0 %v365
    %379 = vmatpush.bf16.msra.mxu0 %v364
    %380 = vmatpush.bf16.msra.mxu0 %v363
    %381 = vmatpush.bf16.msra.mxu0 %v362
    %382 = vmatpush.bf16.msra.mxu0 %v361
    %383 = vmatpush.bf16.msra.mxu0 %v360
    %384 = vmatmul.bf16.gmra.mxu0 %v307
    %v385 = vpop.f32.mrf.mxu0
    %v386 = vadd.f32 %v326, %v385
    %v387 = vpop.f32.mrf.mxu0
    %v388 = vadd.f32 %v326, %v387
    %389 = vdwg.mxu0
    %v390 = vmax.f32 %v386, 0.0
    %v391 = vmax.f32 %v388, 0.0
    %v392 = vpack.c.bf16 %v391, %v390
    %v393 = vld [vmem:[#allocation11] sm:$0xf]
    %v394 = vld [vmem:[#allocation11 + $0x4] sm:$0xf]
    %v395 = vld [vmem:[#allocation11 + $0x8] sm:$0xf]
    %v396 = vld [vmem:[#allocation11 + $0xc] sm:$0xf]
    %v397 = vld [vmem:[#allocation11 + $0x10] sm:$0xf]
    %v398 = vld [vmem:[#allocation11 + $0x14] sm:$0xf]
    %v399 = vld [vmem:[#allocation11 + $0x18] sm:$0xf]
    %v400 = vld [vmem:[#allocation11 + $0x1c] sm:$0xf]
    %v401 = vld [vmem:[#allocation11 + $0x20] sm:$0xf]
    %v402 = vld [vmem:[#allocation11 + $0x24] sm:$0xf]
    %v403 = vld [vmem:[#allocation11 + $0x28] sm:$0xf]
    %v404 = vld [vmem:[#allocation11 + $0x2c] sm:$0xf]
    %v405 = vld [vmem:[#allocation11 + $0x30] sm:$0xf]
    %v406 = vld [vmem:[#allocation11 + $0x34] sm:$0xf]
    %v407 = vld [vmem:[#allocation11 + $0x38] sm:$0xf]
    %v408 = vld [vmem:[#allocation11 + $0x3c] sm:$0xf]
    %v409 = vld [vmem:[%s8] sm:$0x1]
    %v411 = vperm.slane %v409, 0
    %v429 = vunpack.c.l.b16 %v393
    %v430 = vunpack.c.l.b16 %v394
    %v431 = vunpack.c.l.b16 %v395
    %v432 = vunpack.c.l.b16 %v396
    %v433 = vunpack.c.l.b16 %v397
    %v434 = vunpack.c.l.b16 %v398
    %v435 = vunpack.c.l.b16 %v399
    %v436 = vunpack.c.l.b16 %v400
    %v437 = vunpack.c.l.b16 %v401
    %v438 = vunpack.c.l.b16 %v402
    %v439 = vunpack.c.l.b16 %v403
    %v440 = vunpack.c.l.b16 %v404
    %v441 = vunpack.c.l.b16 %v405
    %v442 = vunpack.c.l.b16 %v406
    %v443 = vunpack.c.l.b16 %v407
    %v444 = vunpack.c.l.b16 %v408
    %v445 = vpack.c.b16 %v430, %v429
    %v446 = vpack.c.b16 %v432, %v431
    %v447 = vpack.c.b16 %v434, %v433
    %v448 = vpack.c.b16 %v436, %v435
    %v449 = vpack.c.b16 %v438, %v437
    %v450 = vpack.c.b16 %v440, %v439
    %v451 = vpack.c.b16 %v442, %v441
    %v452 = vpack.c.b16 %v444, %v443
    %461 = vmatpush.bf16.msra.mxu0 %v452
    %462 = vmatpush.bf16.msra.mxu0 %v451
    %463 = vmatpush.bf16.msra.mxu0 %v450
    %464 = vmatpush.bf16.msra.mxu0 %v449
    %465 = vmatpush.bf16.msra.mxu0 %v448
    %466 = vmatpush.bf16.msra.mxu0 %v447
    %467 = vmatpush.bf16.msra.mxu0 %v446
    %468 = vmatpush.bf16.msra.mxu0 %v445
    %469 = vmatmul.bf16.gmra.mxu0 %v392
    %v470 = vpop.f32.mrf.mxu0
    %v471 = vadd.f32 %v411, %v470
    %v472 = vpop.f32.mrf.mxu0
    %v473 = vadd.f32 %v411, %v472
    %474 = vdwg.mxu0
    %475 = vst [vmem:[#allocation13] sm:$0xff] %v471
    %476 = vst [vmem:[#allocation13 + $0x8] sm:$0xff] %v473
    // Predicated region
    $region62: #{tpu_custom_call.1} parent=1 // pred_check
      _
    $region63: #{tpu_custom_call.1} parent=1 // pred_check_branch
      %478 = sbr.rel (0) target = $region65
    $region64: #{tpu_custom_call.1} parent=1 // pred_region
      %480 = vsyncadd [#allocation4], 0
      %s481 = sshll.u32 [#allocation13], 4
      %s482 = int_to_ptr.vmem [resolvable:$true] %s481
      %s483 = sshll.u32 %s9, 4
      %s484 = int_to_ptr.hbm [resolvable:$true] %s483
      %489 = dma.vmem_to_hbm [thread:$0]  %s482, 256, %s484, [#allocation4], 128, 128, 8
    $region65: #{tpu_custom_call.1} parent=1 // pred_fallthru
      _
    // Predicated region
    $region66: #{tpu_custom_call.1} parent=1 // pred_check
      _
    $region67: #{tpu_custom_call.1} parent=1 // pred_check_branch
      %491 = sbr.rel (0) target = $region69
    $region68: #{tpu_custom_call.1} parent=1 // pred_region
      %493 = dma.done [#allocation4], 256
    $region69: #{tpu_custom_call.1} parent=1 // pred_fallthru
      _
    %494 = vsyncpa [#allocation3], 1
    %495 = vsyncpa [#allocation6], 1
    %496 = vsyncpa [#allocation9], 1
    %497 = vsyncpa [#allocation12], 1
    %498 = vsyncpa [#allocation4], 1

</llo_original>
